<compile_context>
chip_gen: v6e
topology: v6e:2x2x1
jax: 0.10.0
libtpu: 0.0.40
codegen_flags: <defaults>
</compile_context>

<pallas_src>
import math

import jax
import jax.numpy as jnp
from jax import lax
from jax.experimental import pallas as pl
from jax.experimental.pallas import tpu as pltpu


def _round_up(x, m):
    return ((x + m - 1) // m) * m


def _pick_lane_tile(L, target=2048):
    """Choose (tile, L_pad): a lane tile (multiple of 128) and the padded lane
    extent (multiple of tile).  Pads up to a multiple of the chosen tile
    (bounded extra <= tile-128) instead of degrading to a 128-lane tile when
    the extent has no nice divisor, and splits into two equal tiles when that
    is free so a v7x megacore gets >=2 parallel grid points."""
    l128 = _round_up(L, 128)
    if l128 <= target:
        n128 = l128 // 128
        if n128 >= 2 and n128 % 2 == 0:
            tile = l128 // 2          # two zero-extra-pad tiles
        else:
            tile = l128               # single tile (this module: 128 lanes)
    else:
        tile = target
    return tile, _round_up(L, tile)


# ----------------------------------------------------------------------------
# Pallas kernel: fused (transposed im2col-matmul + bias + ReLU)
# ----------------------------------------------------------------------------
def _conv_matmul_relu_kernel(p_ref, w_ref, b_ref, o_ref):
    # p_ref: [K, TL]     bf16  (im2col patches, K in sublanes, lanes = (n, hw))
    # w_ref: [C_out, K]  bf16
    # b_ref: [C_out, 1]  f32
    # o_ref: [C_out, TL] f32   (lane-dense output)
    acc = lax.dot_general(
        w_ref[...], p_ref[...],
        dimension_numbers=(((1,), (0,)), ((), ())),
        preferred_element_type=jnp.float32,
    )
    o_ref[...] = jnp.maximum(acc + b_ref[...], 0.0)


def _conv_matmul_relu(patches_t, w_mat, b_col, tile):
    K, L_pad = patches_t.shape
    C_out = w_mat.shape[0]
    grid = (L_pad // tile,)
    return pl.pallas_call(
        _conv_matmul_relu_kernel,
        out_shape=jax.ShapeDtypeStruct((C_out, L_pad), jnp.float32),
        grid_spec=pltpu.PrefetchScalarGridSpec(
            num_scalar_prefetch=0,
            grid=grid,
            in_specs=[
                # patches tile: (K, tile); K equals the full dim, tile % 128 == 0.
                pl.BlockSpec((K, tile), lambda j: (0, j)),
                # weight / bias: constant block index -> fetched once.
                pl.BlockSpec((C_out, K), lambda j: (0, 0)),
                pl.BlockSpec((C_out, 1), lambda j: (0, 0)),
            ],
            out_specs=pl.BlockSpec((C_out, tile), lambda j: (0, j)),
        ),
        compiler_params=pltpu.CompilerParams(
            dimension_semantics=("parallel",),
            vmem_limit_bytes=8 * 1024 * 1024,
            # Allow XLA to fuse the patches producer chain into the Mosaic
            # call's operand read (review item 1, option (a)); weight/bias are
            # tiny, leave them as plain operands.
            allow_input_fusion=[True, False, False],
        ),
    )(patches_t, w_mat, b_col)


# ----------------------------------------------------------------------------
# Glue: patch extraction (single fused XLA op), parameter setup, NCHW plumbing
# ----------------------------------------------------------------------------
def cnn_forward(x, weight, bias, stride=2, pad=2):
    """x: [N, C_in, H, W] NCHW (f32). Returns relu(conv1(x)) in NCHW (f32)."""
    C_out, C_in, KH, KW = weight.shape
    N = x.shape[0]
    K = C_in * KH * KW

    # bf16 for the dominant HBM stream; the MXU accumulates in f32.
    x_bf = x.astype(jnp.bfloat16)

    # im2col in one fused op, emitted directly in K-major ("CNHW") layout:
    # [K, N, H_out, W_out], feature order (c, kh, kw) matching
    # weight.reshape(C_out, K).  No transpose of the patch stream is needed;
    # the trailing reshape is contiguous (fusible into the pallas operand).
    patches = lax.conv_general_dilated_patches(
        x_bf, (KH, KW), (stride, stride), ((pad, pad), (pad, pad)),
        dimension_numbers=("NCHW", "OIHW", "CNHW"),
    )
    Kp, _, H_out, W_out = patches.shape
    assert Kp == K, (Kp, K)

    L = N * H_out * W_out                       # packed lane extent (n, hw)
    tile, L_pad = _pick_lane_tile(L)
    patches = patches.reshape(K, L)
    if L_pad != L:                              # no-op for this module (L == 128)
        patches = jnp.pad(patches, ((0, 0), (0, L_pad - L)))

    w_mat = weight.reshape(C_out, K).astype(jnp.bfloat16)
    b_col = bias.astype(jnp.float32).reshape(C_out, 1)

    out = _conv_matmul_relu(patches, w_mat, b_col, tile)   # [C_out, L_pad]
    if L_pad != L:                              # ragged tail only when padded
        out = out[:, :L]
    # Columns are ordered (n, h, w); a small output-sized transpose -> NCHW.
    return jnp.transpose(out.reshape(C_out, N, H_out, W_out), (1, 0, 2, 3))


def init_params(key, C_in=3, C_out=16, kernel=5):
    std = 1.0 / math.sqrt(5 * 2.5 * C_in)
    w = std * jax.random.normal(key, (C_out, C_in, kernel, kernel), jnp.float32)
    b = jnp.zeros((C_out,), jnp.float32)
    return w, b


if __name__ == "__main__":
    key = jax.random.PRNGKey(0)
    k_w, k_x = jax.random.split(key)

    # Small shapes consistent with the module: N=2, C_in=3, H=W=16.
    x = jax.random.normal(k_x, (2, 3, 16, 16), jnp.float32)
    weight, bias = init_params(k_w)

    out = jax.jit(cnn_forward)(x, weight, bias)
    out = jax.block_until_ready(out)

    # Reference: plain-JAX fp32 conv + bias + ReLU.  Keep this check: it also
    # validates the (c, kh, kw) feature ordering assumed for the patch matrix.
    ref = lax.conv_general_dilated(
        x, weight, window_strides=(2, 2), padding=((2, 2), (2, 2)),
        dimension_numbers=("NCHW", "OIHW", "NCHW"),
    ) + bias.reshape(1, -1, 1, 1)
    ref = jnp.maximum(ref, 0.0)

    assert out.shape == (2, 16, 8, 8), out.shape
    # bf16 inputs with f32 accumulation vs fp32 reference -> relaxed tolerance
    # (expected, not a bug).
    assert jnp.allclose(out, ref, atol=5e-2, rtol=5e-2), (
        float(jnp.max(jnp.abs(out - ref))))

    print("KERNEL_OK")
</pallas_src>

<mosaic_0001>
module attributes {stable_mosaic.version = 11 : i64} {
  func.func @_conv_matmul_relu_kernel(%arg0: i32, %arg1: memref<75x128xbf16, #tpu.memory_space<vmem>>, %arg2: memref<16x75xbf16, #tpu.memory_space<vmem>>, %arg3: memref<16x1xf32, #tpu.memory_space<vmem>>, %arg4: memref<16x128xf32, #tpu.memory_space<vmem>>) attributes {dimension_semantics = [#tpu.dimension_semantics<parallel>], iteration_bounds = array<i64: 1>, scalar_prefetch = 0 : i64, scratch_operands = 0 : i64, tpu.core_type = #tpu.core_type<tc>, window_params = [{transform_indices = @transform_0, window_bounds = array<i64: 75, 128>}, {pipeline_mode = #tpu.pipeline_mode<synchronous>, transform_indices = @transform_1, window_bounds = array<i64: 16, 75>}, {pipeline_mode = #tpu.pipeline_mode<synchronous>, transform_indices = @transform_2, window_bounds = array<i64: 16, 1>}, {transform_indices = @transform_3, window_bounds = array<i64: 16, 128>}]} {
    %c0 = arith.constant 0 : index
    %c0_0 = arith.constant 0 : index
    %0 = vector.load %arg2[%c0, %c0_0] : memref<16x75xbf16, #tpu.memory_space<vmem>>, vector<16x75xbf16>
    %c0_1 = arith.constant 0 : index
    %c0_2 = arith.constant 0 : index
    %1 = vector.load %arg1[%c0_1, %c0_2] : memref<75x128xbf16, #tpu.memory_space<vmem>>, vector<75x128xbf16>
    %cst = arith.constant dense<0.000000e+00> : vector<16x128xf32>
    %2 = tpu.matmul %0, %1, %cst {dimension_numbers = #tpu.dot_dimension_numbers<[1], [0], [0], [1], [0, 0, 1, 1], [], []>} : vector<16x75xbf16>, vector<75x128xbf16>, vector<16x128xf32> -> vector<16x128xf32>
    %c0_3 = arith.constant 0 : index
    %c0_4 = arith.constant 0 : index
    %3 = vector.load %arg3[%c0_3, %c0_4] : memref<16x1xf32, #tpu.memory_space<vmem>>, vector<16x1xf32>
    %4 = vector.broadcast %3 : vector<16x1xf32> to vector<16x128xf32>
    %5 = arith.addf %2, %4 : vector<16x128xf32>
    %cst_5 = arith.constant 0.000000e+00 : f32
    %6 = vector.broadcast %cst_5 : f32 to vector<16x128xf32>
    %7 = arith.maximumf %5, %6 : vector<16x128xf32>
    %c0_6 = arith.constant 0 : index
    %c0_7 = arith.constant 0 : index
    %8 = vector.load %arg4[%c0_6, %c0_7] : memref<16x128xf32, #tpu.memory_space<vmem>>, vector<16x128xf32>
    tpu.vector_store %arg4[%c0_6, %c0_7], %7 {strides = array<i32>} : memref<16x128xf32, #tpu.memory_space<vmem>>, vector<16x128xf32>,
    return
  }
  func.func @transform_0(%arg0: i32) -> (i32, i32) {
    %c0_i32 = arith.constant 0 : i32
    %c0_i32_0 = arith.constant 0 : i32
    return %c0_i32, %arg0 : i32, i32
  }
  func.func @transform_1(%arg0: i32) -> (i32, i32) {
    %c0_i32 = arith.constant 0 : i32
    %c0_i32_0 = arith.constant 0 : i32
    %c0_i32_1 = arith.constant 0 : i32
    return %c0_i32, %c0_i32_0 : i32, i32
  }
  func.func @transform_2(%arg0: i32) -> (i32, i32) {
    %c0_i32 = arith.constant 0 : i32
    %c0_i32_0 = arith.constant 0 : i32
    %c0_i32_1 = arith.constant 0 : i32
    return %c0_i32, %c0_i32_0 : i32, i32
  }
  func.func @transform_3(%arg0: i32) -> (i32, i32) {
    %c0_i32 = arith.constant 0 : i32
    %c0_i32_0 = arith.constant 0 : i32
    return %c0_i32, %arg0 : i32, i32
  }
}

</mosaic_0001>

<llo_original>
// kernel: cnn_forward.1
$region0: #{cnn_forward.1}
  #allocation0 [shape = 'u32[]', space=smem, size = 0x4, offset = 0x4, fixed_abs, tag = 'smem constant byte address 0x4 - core index']
  #allocation1 [shape = 'u32[144,128]{1,0:T(1,128)}', space=vmem, size = 0x12000, scoped, tag = 'internal scratch']
  %s0 = inlined_call_operand.vmem [shape: bf16[75,128], index: 0, kind: input, shape index: {}]
  %s1 = inlined_call_operand.vmem [shape: bf16[16,75], index: 1, kind: input, shape index: {}]
  %s2 = inlined_call_operand.vmem [shape: f32[16,1], index: 2, kind: input, shape index: {}]
  %s3 = inlined_call_operand.vmem [shape: f32[16,128], index: 3, kind: output, shape index: {}]
  %s4 = sld [smem:[#allocation0]]
  $region22: #{cnn_forward.1} parent=0
    _
  %s6 = ssub.s32 1, %s4
  %s7 = scalar_select 0, %s6, %s4
  // Predicated region
  $region2: #{cnn_forward.1} parent=0 // pred_check
    _
  $region3: #{cnn_forward.1} parent=0 // pred_check_branch
    %9 = sbr.rel (0) target = $region5
  $region4: #{cnn_forward.1} parent=0 // pred_region
    _
  $region5: #{cnn_forward.1} parent=0 // pred_fallthru
    _
  // Predicated region
  $region6: #{cnn_forward.1} parent=0 // pred_check
    _
  $region7: #{cnn_forward.1} parent=0 // pred_check_branch
    %11 = sbr.rel (0) target = $region9
  $region8: #{cnn_forward.1} parent=0 // pred_region
    _
  $region9: #{cnn_forward.1} parent=0 // pred_fallthru
    _
  // Predicated region
  $region10: #{cnn_forward.1} parent=0 // pred_check
    _
  $region11: #{cnn_forward.1} parent=0 // pred_check_branch
    %13 = sbr.rel (0) target = $region13
  $region12: #{cnn_forward.1} parent=0 // pred_region
    _
  $region13: #{cnn_forward.1} parent=0 // pred_fallthru
    _
  %v15 = vld [vmem:[%s1] sm:$0xf]
  %v16 = vld [vmem:[%s1 + $0x4] sm:$0xf]
  %v17 = vld [vmem:[%s0] sm:$0xf]
  %v18 = vld [vmem:[%s0 + $0x4] sm:$0xf]
  %v19 = vld [vmem:[%s0 + $0x8] sm:$0xf]
  %v20 = vld [vmem:[%s0 + $0xc] sm:$0xf]
  %v21 = vld [vmem:[%s0 + $0x10] sm:$0xf]
  %v22 = vld [vmem:[%s0 + $0x14] sm:$0xf]
  %v23 = vld [vmem:[%s0 + $0x18] sm:$0xf]
  %v24 = vld [vmem:[%s0 + $0x1c] sm:$0xf]
  %v25 = vld [vmem:[%s0 + $0x20] sm:$0xf]
  %v26 = vld [vmem:[%s0 + $0x24] sm:$0x3]
  %v27 = vld [vmem:[%s2] sm:$0xff]
  %v28 = vld [vmem:[%s2 + $0x8] sm:$0xff]
  %30 = vset.pattern.permute.xlu0 0
  %31 = vperm.xlu0 %30, %v27
  %v32 = vpop.permute.xlu0 %31
  %35 = vset.pattern.permute.xlu0 0
  %36 = vperm.xlu0 %35, %v28
  %v37 = vpop.permute.xlu0 %36
  %v41 = vunpack.c.l.b16 %v15
  %v42 = vunpack.c.l.b16 %v16
  %v43 = vpack.c.b16 %v42, %v41
  %v54 = vunpack.c.l.b16 %v17
  %v55 = vunpack.c.l.b16 %v18
  %v56 = vunpack.c.l.b16 %v19
  %v57 = vunpack.c.l.b16 %v20
  %v58 = vunpack.c.l.b16 %v21
  %v59 = vunpack.c.l.b16 %v22
  %v60 = vunpack.c.l.b16 %v23
  %v61 = vunpack.c.l.b16 %v24
  %v62 = vunpack.c.l.b16 %v25
  %v63 = vunpack.c.l.b16 %v26
  %v64 = vpack.c.b16 %v55, %v54
  %v65 = vpack.c.b16 %v57, %v56
  %v66 = vpack.c.b16 %v59, %v58
  %v67 = vpack.c.b16 %v61, %v60
  %v68 = vpack.c.b16 %v63, %v62
  %vm73 = vcmask 613376
  %v75 = vsel %vm73, %v43, 0
  %vm77 = vcmask 1044480
  %vm78 = vcmask 1045504
  %v79 = vsel %vm77, 4294967295, 65535
  %v80 = vsel %vm78, %v79, 0
  %v82 = vand.u32 %v68, %v80
  %84 = vmatprep.subr.bf16.mxu0 0
  %85 = vmatpush1.bf16.msra.mxu0 0
  %86 = vmatprep.subr.bf16.mxu0 0
  %87 = vmatpush1.bf16.msra.mxu0 0
  %88 = vmatprep.subr.bf16.mxu0 0
  %89 = vmatpush1.bf16.msra.mxu0 0
  %90 = vmatprep.subr.bf16.mxu0 0
  %91 = vmatpush1.bf16.msra.mxu0 %v82
  %92 = vmatprep.subr.bf16.mxu0 0
  %93 = vmatpush1.bf16.msra.mxu0 %v67
  %94 = vmatprep.subr.bf16.mxu0 0
  %95 = vmatpush1.bf16.msra.mxu0 %v66
  %96 = vmatprep.subr.bf16.mxu0 0
  %97 = vmatpush1.bf16.msra.mxu0 %v65
  %98 = vmatprep.subr.bf16.mxu0 0
  %99 = vmatpush1.bf16.msra.mxu0 %v64
  %100 = vmatprep.subr.bf16.mxu0 0
  %101 = vmatpush2.bf16.msra.mxu0 0
  %102 = vmatprep.subr.bf16.mxu0 0
  %103 = vmatpush2.bf16.msra.mxu0 0
  %104 = vmatprep.subr.bf16.mxu0 0
  %105 = vmatpush2.bf16.msra.mxu0 0
  %106 = vmatprep.subr.bf16.mxu0 0
  %107 = vmatpush2.bf16.msra.mxu0 0
  %108 = vmatprep.subr.bf16.mxu0 0
  %109 = vmatpush2.bf16.msra.mxu0 0
  %110 = vmatprep.subr.bf16.mxu0 0
  %111 = vmatpush2.bf16.msra.mxu0 0
  %112 = vmatprep.subr.bf16.mxu0 0
  %113 = vmatpush2.bf16.msra.mxu0 0
  %114 = vmatprep.subr.bf16.mxu0 0
  %115 = vmatpush2.bf16.msra.mxu0 0
  %116 = vmatprep.mubr.bf16.mxu0 0
  %117 = vmatmul.mubr.bf16.gmra.mxu0 %v75
  %v118 = vpop.f32.mrf.mxu0
  %v119 = vadd.f32 %v32, %v118
  %v120 = vpop.f32.mrf.mxu0
  %v121 = vpop.f32.mrf.mxu0
  %v122 = vadd.f32 %v37, %v121
  %v123 = vpop.f32.mrf.mxu0
  %124 = vdwg.mxu0
  %v125 = vmax.f32 %v119, 0.0
  %v126 = vmax.f32 %v122, 0.0
  %127 = vst [vmem:[%s3] sm:$0xff] %v125
  %128 = vst [vmem:[%s3 + $0x8] sm:$0xff] %v126
  // Predicated region
  $region14: #{cnn_forward.1} parent=0 // pred_check
    _
  $region15: #{cnn_forward.1} parent=0 // pred_check_branch
    %130 = sbr.rel (0) target = $region17
  $region16: #{cnn_forward.1} parent=0 // pred_region
    _
  $region17: #{cnn_forward.1} parent=0 // pred_fallthru
    _
  // Predicated region
  $region18: #{cnn_forward.1} parent=0 // pred_check
    _
  $region19: #{cnn_forward.1} parent=0 // pred_check_branch
    %132 = sbr.rel (0) target = $region21
  $region20: #{cnn_forward.1} parent=0 // pred_region
    _
  $region21: #{cnn_forward.1} parent=0 // pred_fallthru
    _

</llo_original>
